<compile_context>
chip_gen: v7x
topology: tpu7x:2x2x1
jax: 0.10.0
libtpu: 0.0.40
codegen_flags: <defaults>
</compile_context>

<pallas_src>
import functools

import jax
import jax.numpy as jnp
from jax.experimental import pallas as pl
from jax.experimental.pallas import tpu as pltpu


# ---------------------------------------------------------------------------
# VMEM limit (generation aware)
# ---------------------------------------------------------------------------

def _vmem_limit_bytes():
    try:
        cap = int(pltpu.get_tpu_info().vmem_capacity_bytes)
    except Exception:
        cap = 128 * 1024 * 1024
    # ~75% of physical, capped: v7x (64 MiB) -> 48 MiB, v5e/v6e (128 MiB) -> 96 MiB.
    return int(min(cap - cap // 4, 100 * 1024 * 1024))


# ---------------------------------------------------------------------------
# Pallas kernels
# ---------------------------------------------------------------------------

def _aspp_fused_kernel(x_hbm, w0_ref, b0_ref, wa_ref, ba_ref, wp0_ref, wpa_ref,
                       pbias_ref, o_ref, xwin, sem, *, TH, W, dmax, rates):
    """Fused ASPP: branch0 + atrous branches + concat + project (+ final ReLU).

    x_hbm    : (N, H, Wp, Cin) bf16 HBM ref (W-padded by dmax), manual DMA
    w0_ref   : (Cin, Cout) bf16         branch0 1x1 weights (BN scale folded)
    b0_ref   : (1, Cout)   f32          branch0 folded BN bias
    wa_ref   : (R, 3, 3, Cin, Cout) bf16 atrous weights (kh, kw kept separate)
    ba_ref   : (R, 1, Cout) f32
    wp0_ref  : (Cout, Cp)   bf16        project slab for branch0
    wpa_ref  : (R, Cout, Cp) bf16       project slabs for atrous branches
    pbias_ref: (1, Cp)      f32         pooling-branch contribution + proj bias
    o_ref    : (Cp, TH*W)   f32         NCHW output block for this tile
    xwin     : (2, TH+2*dmax, Wp, Cin) bf16 VMEM halo-window double buffer
    sem      : (2, 3) DMA semaphores (top / body / bottom per slot)
    """
    n = pl.program_id(0)
    h = pl.program_id(1)
    nH = pl.num_programs(1)
    _, WIN, Wp, Cin = xwin.shape

    # ---- manual halo-window DMA (double-buffered) ---------------------------
    def copies(h_t, slot):
        row0 = pl.multiple_of(h_t * TH, TH)
        top = pltpu.make_async_copy(
            x_hbm.at[n, pl.ds(row0 - dmax, dmax)],
            xwin.at[slot, pl.ds(0, dmax)], sem.at[slot, 0])
        body = pltpu.make_async_copy(
            x_hbm.at[n, pl.ds(row0, TH)],
            xwin.at[slot, pl.ds(dmax, TH)], sem.at[slot, 1])
        bot = pltpu.make_async_copy(
            x_hbm.at[n, pl.ds(row0 + TH, dmax)],
            xwin.at[slot, pl.ds(dmax + TH, dmax)], sem.at[slot, 2])
        return top, body, bot

    def issue(h_t, slot):
        top, body, bot = copies(h_t, slot)
        body.start()

        @pl.when(h_t > 0)                 # top halo exists unless first tile
        def _():
            top.start()

        @pl.when(h_t < nH - 1)            # bottom halo exists unless last tile
        def _():
            bot.start()

    def wait(h_t, slot):
        top, body, bot = copies(h_t, slot)
        body.wait()

        @pl.when(h_t > 0)
        def _():
            top.wait()

        @pl.when(h_t < nH - 1)
        def _():
            bot.wait()

    slot = h % 2

    @pl.when(h == 0)                      # cold start for this batch element
    def _():
        issue(h, slot)

    wait(h, slot)

    @pl.when(h + 1 < nH)                  # prefetch next tile into other slot
    def _():
        issue(h + 1, 1 - slot)

    # Zero-fill halo rows that fall outside the image (left/right columns were
    # zero-padded in HBM already).
    @pl.when(h == 0)
    def _():
        xwin[slot, 0:dmax, :, :] = jnp.zeros((dmax, Wp, Cin), xwin.dtype)

    @pl.when(h == nH - 1)
    def _():
        xwin[slot, dmax + TH:, :, :] = jnp.zeros((dmax, Wp, Cin), xwin.dtype)

    # ---- branch 0: 1x1 conv -> (folded BN) -> ReLU, then its project slab ---
    x0 = xwin[slot, dmax:dmax + TH, dmax:dmax + W, :].reshape(TH * W, Cin)
    y0 = jnp.maximum(
        jnp.dot(x0, w0_ref[...], preferred_element_type=jnp.float32)
        + b0_ref[...], 0.0)
    out = jnp.dot(y0.astype(wp0_ref.dtype), wp0_ref[...],
                  preferred_element_type=jnp.float32)

    # ---- atrous branches: 3x3 dilated conv = 9 K=Cin matmuls per rate -------
    for r, d in enumerate(rates):
        yr = ba_ref[r]                                    # (1, Cout) f32
        for kh in range(3):
            rs = dmax + (kh - 1) * d
            for kw in range(3):
                cs = dmax + (kw - 1) * d
                tap = xwin[slot, rs:rs + TH, cs:cs + W, :].reshape(TH * W, Cin)
                yr = yr + jnp.dot(tap, wa_ref[r, kh, kw],
                                  preferred_element_type=jnp.float32)
        yr = jnp.maximum(yr, 0.0).astype(wpa_ref.dtype)
        out = out + jnp.dot(yr, wpa_ref[r], preferred_element_type=jnp.float32)

    # ---- add pooled-branch contribution (incl. project BN bias), final ReLU.
    # Dropout(0.5) after the project ReLU is identity in eval mode.
    out = jnp.maximum(out + pbias_ref[...], 0.0)
    o_ref[...] = out.T.astype(o_ref.dtype)                # (Cp, TH*W) -> NCHW


def _pool_project_kernel(mean_ref, wpool_ref, bpool_ref, wprojp_ref, bproj_ref,
                         o_ref):
    """mean -> 1x1 conv -> BN -> ReLU, pushed through its project slab.

    Bilinear upsampling of a 1x1 map (align_corners=False) is a broadcast, so
    the pooling branch contributes a spatially-constant (1, Cp) vector to the
    project conv; emit that vector (+ the project BN bias)."""
    yp = jnp.maximum(
        jnp.dot(mean_ref[...], wpool_ref[...], preferred_element_type=jnp.float32)
        + bpool_ref[...], 0.0)
    o_ref[...] = (jnp.dot(yp.astype(wprojp_ref.dtype), wprojp_ref[...],
                          preferred_element_type=jnp.float32) + bproj_ref[...])


# ---------------------------------------------------------------------------
# pallas_call wrappers
# ---------------------------------------------------------------------------

def _pool_project_bias(mean_bf16, wpool, bpool, wprojp, bproj):
    N, _, Cin = mean_bf16.shape
    Cout = wpool.shape[-1]
    Cp = wprojp.shape[-1]
    return pl.pallas_call(
        _pool_project_kernel,
        out_shape=jax.ShapeDtypeStruct((N, 1, Cp), jnp.float32),
        grid=(N,),
        in_specs=[
            pl.BlockSpec((None, 1, Cin), lambda n: (n, 0, 0)),
            pl.BlockSpec((Cin, Cout), lambda n: (0, 0)),
            pl.BlockSpec((1, Cout), lambda n: (0, 0)),
            pl.BlockSpec((Cout, Cp), lambda n: (0, 0)),
            pl.BlockSpec((1, Cp), lambda n: (0, 0)),
        ],
        out_specs=pl.BlockSpec((None, 1, Cp), lambda n: (n, 0, 0)),
        compiler_params=pltpu.CompilerParams(
            dimension_semantics=("parallel",),
            vmem_limit_bytes=_vmem_limit_bytes()),
    )(mean_bf16, wpool, bpool, wprojp, bproj)


def _fused_aspp(x_wpad, w0, b0, wa, ba, wp0, wpa, pbias, *, rates, H, W, TH,
                dmax, single_buffer_weights):
    N, _, Wp, Cin = x_wpad.shape
    Cout = w0.shape[-1]
    Cp = wp0.shape[-1]
    R = len(rates)
    nH = H // TH
    kern = functools.partial(_aspp_fused_kernel, TH=TH, W=W, dmax=dmax,
                             rates=tuple(rates))

    def wspec(shape):
        idx = lambda n, h: (0,) * len(shape)
        if single_buffer_weights:
            # constant-index weight blocks: a single VMEM buffer is enough
            return pl.BlockSpec(shape, idx, pipeline_mode=pl.Buffered(1))
        return pl.BlockSpec(shape, idx)

    return pl.pallas_call(
        kern,
        out_shape=jax.ShapeDtypeStruct((N, Cp, H * W), jnp.float32),
        grid=(N, nH),
        in_specs=[
            pl.BlockSpec(memory_space=pl.ANY),            # x stays in HBM
            wspec((Cin, Cout)),
            pl.BlockSpec((1, Cout), lambda n, h: (0, 0)),
            wspec((R, 3, 3, Cin, Cout)),
            pl.BlockSpec((R, 1, Cout), lambda n, h: (0, 0, 0)),
            wspec((Cout, Cp)),
            wspec((R, Cout, Cp)),
            pl.BlockSpec((None, 1, Cp), lambda n, h: (n, 0, 0)),
        ],
        out_specs=pl.BlockSpec((None, Cp, TH * W), lambda n, h: (n, 0, h)),
        scratch_shapes=[
            pltpu.VMEM((2, TH + 2 * dmax, Wp, Cin), x_wpad.dtype),
            pltpu.SemaphoreType.DMA((2, 3)),
        ],
        compiler_params=pltpu.CompilerParams(
            dimension_semantics=("parallel", "arbitrary"),
            vmem_limit_bytes=_vmem_limit_bytes()),
    )(x_wpad, w0, b0, wa, ba, wp0, wpa, pbias)


# ---------------------------------------------------------------------------
# Parameters (deterministic synthetic init; BN folded to scale/bias)
# ---------------------------------------------------------------------------

def _bn_fold(gamma, beta, mean, var, eps=1e-5):
    scale = gamma / jnp.sqrt(var + eps)
    bias = beta - mean * scale
    return scale, bias


def _make_branch(key, cin, cout, khw):
    k1, k2, k3, k4, k5 = jax.random.split(key, 5)
    fan_in = cin * khw * khw
    w = jax.random.normal(k1, (khw, khw, cin, cout), jnp.float32) / jnp.sqrt(fan_in)
    gamma = jax.random.uniform(k2, (cout,), jnp.float32, 0.5, 1.5)
    beta = 0.1 * jax.random.normal(k3, (cout,), jnp.float32)
    mean = 0.1 * jax.random.normal(k4, (cout,), jnp.float32)
    var = jax.random.uniform(k5, (cout,), jnp.float32, 0.5, 1.5)
    scale, bias = _bn_fold(gamma, beta, mean, var)
    return w, scale, bias


def init_aspp_params(key, in_channels, atrous_rates, out_channels):
    n_branches = 2 + len(atrous_rates)
    keys = jax.random.split(key, n_branches + 1)
    params = {}
    params["branch0"] = _make_branch(keys[0], in_channels, out_channels, 1)
    for i, _ in enumerate(atrous_rates):
        params[f"atrous{i}"] = _make_branch(keys[1 + i], in_channels, out_channels, 3)
    params["pool"] = _make_branch(keys[1 + len(atrous_rates)], in_channels, out_channels, 1)
    params["project"] = _make_branch(keys[-1], n_branches * out_channels, out_channels, 1)
    return params


# ---------------------------------------------------------------------------
# Forward pass (NCHW in / NCHW out, like the PyTorch module)
# ---------------------------------------------------------------------------

def _pick_tile_h(H, W, Cin, dmax, *, window_budget_bytes=8 << 20):
    """Largest divisor-of-H row tile whose double-buffered bf16 halo window fits
    the budget.  TH must keep the output lane dim (TH*W) 128-dense and be at
    least dmax rows tall (so halo DMAs never need clipping except at the image
    top/bottom) unless TH == H."""
    Wp = W + 2 * dmax
    cands = [c for c in range(1, H + 1)
             if H % c == 0 and (c == H or (c >= dmax and (c * W) % 128 == 0))]
    fitting = [c for c in cands
               if 2 * (c + 2 * dmax) * Wp * Cin * 2 <= window_budget_bytes]
    return max(fitting) if fitting else min(cands)


def quantizable_aspp_forward(x_nchw, params, atrous_rates, *, tile_h=None):
    rates = tuple(atrous_rates)
    assert len(rates) >= 1, "ASPP expects at least one atrous rate"
    x = jnp.transpose(x_nchw, (0, 2, 3, 1)).astype(jnp.float32)   # NCHW -> NHWC
    N, H, W, Cin = x.shape
    dmax = max(rates)

    # ---- fold eval-mode BatchNorm into conv weights / per-channel biases ----
    w0, s0, b0 = params["branch0"]
    w0f = (w0[0, 0] * s0).astype(jnp.bfloat16)                     # (Cin, Cout)
    b0f = b0.reshape(1, -1).astype(jnp.float32)
    Cout = w0f.shape[-1]

    wa = jnp.stack([params[f"atrous{i}"][0] * params[f"atrous{i}"][1]
                    for i in range(len(rates))]).astype(jnp.bfloat16)  # (R,3,3,Cin,Cout)
    ba = jnp.stack([params[f"atrous{i}"][2].reshape(1, Cout)
                    for i in range(len(rates))]).astype(jnp.float32)

    wpool, spool, bpool = params["pool"]
    wpoolf = (wpool[0, 0] * spool).astype(jnp.bfloat16)
    bpoolf = bpool.reshape(1, -1).astype(jnp.float32)

    wproj, sproj, bproj = params["project"]
    wprojf = wproj[0, 0] * sproj                                   # (n_br*Cout, Cp)
    Cp = wprojf.shape[-1]
    bprojf = bproj.reshape(1, -1).astype(jnp.float32)
    wp0 = wprojf[:Cout].astype(jnp.bfloat16)
    wpa = jnp.stack([wprojf[(1 + i) * Cout:(2 + i) * Cout]
                     for i in range(len(rates))]).astype(jnp.bfloat16)
    wpp = wprojf[(1 + len(rates)) * Cout:].astype(jnp.bfloat16)

    # ---- pooling branch -> per-batch (1, Cp) bias for the fused projection --
    mean = jnp.mean(x, axis=(1, 2)).reshape(N, 1, Cin)             # f32 reduction
    pbias = _pool_project_bias(mean.astype(jnp.bfloat16), wpoolf, bpoolf,
                               wpp, bprojf)                        # (N, 1, Cp)

    # ---- W-only zero pad (H halos are zero-filled inside the kernel) --------
    x_wpad = jnp.pad(x.astype(jnp.bfloat16),
                     ((0, 0), (0, 0), (dmax, dmax), (0, 0)))       # (N,H,Wp,Cin)

    TH = tile_h if tile_h is not None else _pick_tile_h(H, W, Cin, dmax)
    assert H % TH == 0, (H, TH)
    assert TH == H or (TH >= dmax and (TH * W) % 128 == 0), (H, W, TH, dmax)

    def run(single_buffer_weights):
        return _fused_aspp(x_wpad, w0f, b0f, wa, ba, wp0, wpa, pbias,
                           rates=rates, H=H, W=W, TH=TH, dmax=dmax,
                           single_buffer_weights=single_buffer_weights)

    try:
        out = run(True)    # single-buffered constant weight blocks (VMEM saver)
    except Exception:
        out = run(False)   # fall back to default double-buffered weights

    # Dropout(0.5) is identity in eval mode (inference semantics).
    return out.reshape(N, Cp, H, W)                                # already NCHW


# ---------------------------------------------------------------------------
# Pure-JAX reference (for verification only)
# ---------------------------------------------------------------------------

def _reference_forward(x_nchw, params, atrous_rates):
    x = jnp.transpose(x_nchw, (0, 2, 3, 1)).astype(jnp.float32)

    def conv(inp, w, d=1, pad=0):
        return jax.lax.conv_general_dilated(
            inp, w, window_strides=(1, 1),
            padding=((pad, pad), (pad, pad)),
            rhs_dilation=(d, d),
            dimension_numbers=("NHWC", "HWIO", "NHWC"),
            precision=jax.lax.Precision.HIGHEST)

    outs = []
    w, s, b = params["branch0"]
    outs.append(jax.nn.relu(conv(x, w) * s + b))
    for i, d in enumerate(atrous_rates):
        w, s, b = params[f"atrous{i}"]
        outs.append(jax.nn.relu(conv(x, w, d=d, pad=d) * s + b))
    w, s, b = params["pool"]
    pooled = jnp.mean(x, axis=(1, 2), keepdims=True)
    y = jax.nn.relu(conv(pooled, w) * s + b)
    outs.append(jnp.broadcast_to(y, x.shape[:3] + (y.shape[-1],)))
    res = jnp.concatenate(outs, axis=-1)
    w, s, b = params["project"]
    out = jax.nn.relu(conv(res, w) * s + b)
    return jnp.transpose(out, (0, 3, 1, 2))


# ---------------------------------------------------------------------------

if __name__ == "__main__":
    # Small but lane-friendly shapes (the real module uses in=2048, out=256;
    # 128-multiple channels keep MXU tiles and HBM stores dense).
    N, IN_CH, H, W = 2, 128, 16, 16
    OUT_CH = 128
    ATROUS_RATES = (2, 3)

    key = jax.random.PRNGKey(0)
    kx, kp = jax.random.split(key)
    x = jax.random.normal(kx, (N, IN_CH, H, W), jnp.float32)
    params = init_aspp_params(kp, IN_CH, ATROUS_RATES, OUT_CH)

    # tile_h=8 -> grid (N, 2): exercises the halo-window double-buffer path.
    out = quantizable_aspp_forward(x, params, ATROUS_RATES, tile_h=8)
    out = jax.block_until_ready(out)

    ref = _reference_forward(x, params, ATROUS_RATES)
    assert out.shape == (N, OUT_CH, H, W), out.shape
    # bf16 MXU operands vs. the fp32 HIGHEST-precision reference: ~1e-2 level.
    max_err = float(jnp.max(jnp.abs(out - ref)))
    assert max_err < 1e-1, f"mismatch vs reference: {max_err}"

    print("KERNEL_OK")
</pallas_src>

<mosaic_0001>
module attributes {stable_mosaic.version = 11 : i64} {
  func.func @_pool_project_kernel(%arg0: i32, %arg1: memref<1x1x128xbf16, #tpu.memory_space<vmem>>, %arg2: memref<128x128xbf16, #tpu.memory_space<vmem>>, %arg3: memref<1x128xf32, #tpu.memory_space<vmem>>, %arg4: memref<128x128xbf16, #tpu.memory_space<vmem>>, %arg5: memref<1x128xf32, #tpu.memory_space<vmem>>, %arg6: memref<1x1x128xf32, #tpu.memory_space<vmem>>) attributes {dimension_semantics = [#tpu.dimension_semantics<parallel>], iteration_bounds = array<i64: 2>, scalar_prefetch = 0 : i64, scratch_operands = 0 : i64, tpu.core_type = #tpu.core_type<tc>, window_params = [{transform_indices = @transform_0, window_bounds = array<i64: 1, 1, 128>}, {pipeline_mode = #tpu.pipeline_mode<synchronous>, transform_indices = @transform_1, window_bounds = array<i64: 128, 128>}, {pipeline_mode = #tpu.pipeline_mode<synchronous>, transform_indices = @transform_2, window_bounds = array<i64: 1, 128>}, {pipeline_mode = #tpu.pipeline_mode<synchronous>, transform_indices = @transform_3, window_bounds = array<i64: 128, 128>}, {pipeline_mode = #tpu.pipeline_mode<synchronous>, transform_indices = @transform_4, window_bounds = array<i64: 1, 128>}, {transform_indices = @transform_5, window_bounds = array<i64: 1, 1, 128>}]} {
    %c0 = arith.constant 0 : index
    %c0_0 = arith.constant 0 : index
    %c0_1 = arith.constant 0 : index
    %0 = vector.load %arg1[%c0, %c0_0, %c0_1] : memref<1x1x128xbf16, #tpu.memory_space<vmem>>, vector<1x1x128xbf16>
    %1 = vector.shape_cast %0 : vector<1x1x128xbf16> to vector<1x128xbf16>
    %c0_2 = arith.constant 0 : index
    %c0_3 = arith.constant 0 : index
    %2 = vector.load %arg2[%c0_2, %c0_3] : memref<128x128xbf16, #tpu.memory_space<vmem>>, vector<128x128xbf16>
    %cst = arith.constant dense<0.000000e+00> : vector<1x128xf32>
    %3 = tpu.matmul %1, %2, %cst {dimension_numbers = #tpu.dot_dimension_numbers<[1], [0], [0], [1], [0, 0, 1, 1], [], []>} : vector<1x128xbf16>, vector<128x128xbf16>, vector<1x128xf32> -> vector<1x128xf32>
    %c0_4 = arith.constant 0 : index
    %c0_5 = arith.constant 0 : index
    %4 = vector.load %arg3[%c0_4, %c0_5] : memref<1x128xf32, #tpu.memory_space<vmem>>, vector<1x128xf32>
    %5 = arith.addf %3, %4 : vector<1x128xf32>
    %cst_6 = arith.constant 0.000000e+00 : f32
    %6 = vector.broadcast %cst_6 : f32 to vector<1x128xf32>
    %7 = arith.maximumf %5, %6 : vector<1x128xf32>
    %8 = arith.truncf %7 : vector<1x128xf32> to vector<1x128xbf16>
    %c0_7 = arith.constant 0 : index
    %c0_8 = arith.constant 0 : index
    %9 = vector.load %arg4[%c0_7, %c0_8] : memref<128x128xbf16, #tpu.memory_space<vmem>>, vector<128x128xbf16>
    %cst_9 = arith.constant dense<0.000000e+00> : vector<1x128xf32>
    %10 = tpu.matmul %8, %9, %cst_9 {dimension_numbers = #tpu.dot_dimension_numbers<[1], [0], [0], [1], [0, 0, 1, 1], [], []>} : vector<1x128xbf16>, vector<128x128xbf16>, vector<1x128xf32> -> vector<1x128xf32>
    %c0_10 = arith.constant 0 : index
    %c0_11 = arith.constant 0 : index
    %11 = vector.load %arg5[%c0_10, %c0_11] : memref<1x128xf32, #tpu.memory_space<vmem>>, vector<1x128xf32>
    %12 = arith.addf %10, %11 : vector<1x128xf32>
    %c0_12 = arith.constant 0 : index
    %c0_13 = arith.constant 0 : index
    %c0_14 = arith.constant 0 : index
    %13 = vector.load %arg6[%c0_12, %c0_13, %c0_14] : memref<1x1x128xf32, #tpu.memory_space<vmem>>, vector<1x1x128xf32>
    %14 = vector.shape_cast %13 : vector<1x1x128xf32> to vector<1x128xf32>
    %15 = vector.shape_cast %12 : vector<1x128xf32> to vector<1x1x128xf32>
    tpu.vector_store %arg6[%c0_12, %c0_13, %c0_14], %15 {strides = array<i32>} : memref<1x1x128xf32, #tpu.memory_space<vmem>>, vector<1x1x128xf32>,
    return
  }
  func.func @transform_0(%arg0: i32) -> (i32, i32, i32) {
    %c0_i32 = arith.constant 0 : i32
    %c0_i32_0 = arith.constant 0 : i32
    %c0_i32_1 = arith.constant 0 : i32
    return %arg0, %c0_i32, %c0_i32_0 : i32, i32, i32
  }
  func.func @transform_1(%arg0: i32) -> (i32, i32) {
    %c0_i32 = arith.constant 0 : i32
    %c0_i32_0 = arith.constant 0 : i32
    %c0_i32_1 = arith.constant 0 : i32
    return %c0_i32, %c0_i32_0 : i32, i32
  }
  func.func @transform_2(%arg0: i32) -> (i32, i32) {
    %c0_i32 = arith.constant 0 : i32
    %c0_i32_0 = arith.constant 0 : i32
    %c0_i32_1 = arith.constant 0 : i32
    return %c0_i32, %c0_i32_0 : i32, i32
  }
  func.func @transform_3(%arg0: i32) -> (i32, i32) {
    %c0_i32 = arith.constant 0 : i32
    %c0_i32_0 = arith.constant 0 : i32
    %c0_i32_1 = arith.constant 0 : i32
    return %c0_i32, %c0_i32_0 : i32, i32
  }
  func.func @transform_4(%arg0: i32) -> (i32, i32) {
    %c0_i32 = arith.constant 0 : i32
    %c0_i32_0 = arith.constant 0 : i32
    %c0_i32_1 = arith.constant 0 : i32
    return %c0_i32, %c0_i32_0 : i32, i32
  }
  func.func @transform_5(%arg0: i32) -> (i32, i32, i32) {
    %c0_i32 = arith.constant 0 : i32
    %c0_i32_0 = arith.constant 0 : i32
    %c0_i32_1 = arith.constant 0 : i32
    return %arg0, %c0_i32, %c0_i32_0 : i32, i32, i32
  }
}

</mosaic_0001>

<llo_original>
// kernel: tpu_custom_call.1
$region0: #{tpu_custom_call.1}
  #allocation0 [shape = 'u32[]', space=smem, size = 0x4, offset = 0x4, fixed_abs, tag = 'smem constant byte address 0x4 - core index']
  #allocation1 [shape = 'u32[144,128]{1,0:T(1,128)}', space=vmem, size = 0x12000, scoped, tag = 'internal scratch']
  %s0 = inlined_call_operand.hbm [shape: bf16[2,1,128], index: 0, kind: input, shape index: {}]
  %s1 = inlined_call_operand.hbm [shape: bf16[128,128], index: 1, kind: input, shape index: {}]
  %s2 = inlined_call_operand.hbm [shape: f32[1,128], index: 2, kind: input, shape index: {}]
  %s3 = inlined_call_operand.hbm [shape: bf16[128,128], index: 3, kind: input, shape index: {}]
  %s4 = inlined_call_operand.hbm [shape: f32[1,128], index: 4, kind: input, shape index: {}]
  %s5 = inlined_call_operand.hbm [shape: f32[2,1,128], index: 5, kind: output, shape index: {}]
  %s6 = sld [smem:[#allocation0]]
  $region73: #{tpu_custom_call.1} parent=0
    _
  %s8 = ssub.s32 1, %s6
  %s9 = scalar_select 0, %s8, %s6
  $region1: #{tpu_custom_call.1} parent=0
    #allocation2 [shape = 'u8[1024]{0}', space=vmem, size = 0x400, scoped, tag = 'input window, operand 0']
    #allocation3 [shape = 's32[2]{0}', space=sflag, size = 0x8, scoped, tag = 'scoped memory for tpu_custom_call.1']
    #allocation4 [shape = 's32[2]{0}', space=sflag, size = 0x8, scoped, tag = 'scoped memory for tpu_custom_call.1']
    #allocation5 [shape = 'u8[32768]{0}', space=vmem, size = 0x8000, scoped, tag = 'input window, operand 1, single buffered']
    #allocation6 [shape = 's32[1]{0}', space=sflag, size = 0x4, scoped, tag = 'scoped memory for tpu_custom_call.1']
    #allocation7 [shape = 'u8[512]{0}', space=vmem, size = 0x400, scoped, tag = 'input window, operand 2, single buffered']
    #allocation8 [shape = 'u8[32768]{0}', space=vmem, size = 0x8000, scoped, tag = 'input window, operand 3, single buffered']
    #allocation9 [shape = 's32[1]{0}', space=sflag, size = 0x4, scoped, tag = 'scoped memory for tpu_custom_call.1']
    #allocation10 [shape = 'u8[512]{0}', space=vmem, size = 0x400, scoped, tag = 'input window, operand 4, single buffered']
    #allocation11 [shape = 'u8[1024]{0}', space=vmem, size = 0x400, scoped, tag = 'output window, operand 0']
    %10 = vsyncpa [#allocation3], 0
    %s11 = scalar_lea.sflag [#allocation3], 1
    %12 = vsyncpa %s11, 0
    %13 = vsyncpa [#allocation6], 0
    %14 = vsyncpa [#allocation9], 0
    %15 = vsyncpa [#allocation4], 0
    %s16 = scalar_lea.sflag [#allocation4], 1
    %17 = vsyncpa %s16, 0
    loop: start=0, step=1, limit=4
    $region2: #{tpu_custom_call.1} parent=1 // loop_pre_header
      _
    $region3: #{tpu_custom_call.1} parent=1 // loop_header
      %s19 = sphi 0, %s23
      %p20 = scmp.ge.s32.totalorder %s19, 4
      %s29 = sphi 0, %s31
      %s32 = sphi 0, %s29
      %s33 = sphi 0, %s32
      %s49 = sphi 0, %s33
      %s53 = sphi 0, %s53
      %s55 = sphi 0, %s53
      %s56 = sphi 0, %s55
      %s70 = sphi 0, %s56
      %s74 = sphi 0, %s74
      %s76 = sphi 0, %s74
      %s77 = sphi 0, %s76
      %s91 = sphi 0, %s77
      %s95 = sphi 0, %s95
      %s97 = sphi 0, %s95
      %s98 = sphi 0, %s97
      %s112 = sphi 0, %s98
      %s116 = sphi 0, %s116
      %s118 = sphi 0, %s116
      %s119 = sphi 0, %s118
      %s133 = sphi 0, %s119
      %s139 = sphi 0, %s141
      %s142 = sphi 0, %s139
      %s143 = sphi 0, %s142
      %s159 = sphi 0, %s143
    $region4: #{tpu_custom_call.1} parent=1 // loop_header_branch
      %22 = sbr.rel (%p20) target = $region8
    $region5: #{tpu_custom_call.1} parent=1 // loop_body
      %s24 = ssub.s32 %s19, 1
      %s25 = ssub.s32 %s19, 2
      %s26 = sadd.s32 %s19, 1
      %s27 = ssub.s32 %s19, %s26
      %p28 = scmp.eq.s32.totalorder %s27, 0
      %s30 = sadd.s32 %s29, 1
      %s31 = scalar_select %p28, %s29, %s30
      %p34 = pneg %p28
      %p35 = scmp.eq.s32.totalorder %s19, 1
      %p36 = por %p34, %p35
      %p37 = scmp.ne.s32.totalorder %s29, %s32
      %p38 = scmp.eq.s32.totalorder %s19, 0
      %p39 = por %p37, %p38
      %p40 = scmp.ne.s32.totalorder %s29, %s32
      %p41 = scmp.eq.s32.totalorder %s24, 1
      %p42 = por %p40, %p41
      %p43 = scmp.ne.s32.totalorder %s32, %s33
      %p44 = scmp.eq.s32.totalorder %s24, 0
      %p45 = por %p43, %p44
      %p46 = scmp.ne.s32.totalorder %s32, %s33
      %p47 = scmp.eq.s32.totalorder %s25, 1
      %p48 = por %p46, %p47
      %p50 = scmp.ne.s32.totalorder %s33, %s49
      %p51 = scmp.eq.s32.totalorder %s25, 0
      %p52 = por %p50, %p51
      %s54 = sadd.s32 %s53, 1
      %p57 = scmp.eq.s32.totalorder %s19, 1
      %p58 = scmp.ne.s32.totalorder %s53, %s55
      %p59 = scmp.eq.s32.totalorder %s19, 0
      %p60 = por %p58, %p59
      %p61 = scmp.ne.s32.totalorder %s53, %s55
      %p62 = scmp.eq.s32.totalorder %s24, 1
      %p63 = por %p61, %p62
      %p64 = scmp.ne.s32.totalorder %s55, %s56
      %p65 = scmp.eq.s32.totalorder %s24, 0
      %p66 = por %p64, %p65
      %p67 = scmp.ne.s32.totalorder %s55, %s56
      %p68 = scmp.eq.s32.totalorder %s25, 1
      %p69 = por %p67, %p68
      %p71 = scmp.ne.s32.totalorder %s56, %s70
      %p72 = scmp.eq.s32.totalorder %s25, 0
      %p73 = por %p71, %p72
      %s75 = sadd.s32 %s74, 1
      %p78 = scmp.eq.s32.totalorder %s19, 1
      %p79 = scmp.ne.s32.totalorder %s74, %s76
      %p80 = scmp.eq.s32.totalorder %s19, 0
      %p81 = por %p79, %p80
      %p82 = scmp.ne.s32.totalorder %s74, %s76
      %p83 = scmp.eq.s32.totalorder %s24, 1
      %p84 = por %p82, %p83
      %p85 = scmp.ne.s32.totalorder %s76, %s77
      %p86 = scmp.eq.s32.totalorder %s24, 0
      %p87 = por %p85, %p86
      %p88 = scmp.ne.s32.totalorder %s76, %s77
      %p89 = scmp.eq.s32.totalorder %s25, 1
      %p90 = por %p88, %p89
      %p92 = scmp.ne.s32.totalorder %s77, %s91
      %p93 = scmp.eq.s32.totalorder %s25, 0
      %p94 = por %p92, %p93
      %s96 = sadd.s32 %s95, 1
      %p99 = scmp.eq.s32.totalorder %s19, 1
      %p100 = scmp.ne.s32.totalorder %s95, %s97
      %p101 = scmp.eq.s32.totalorder %s19, 0
      %p102 = por %p100, %p101
      %p103 = scmp.ne.s32.totalorder %s95, %s97
      %p104 = scmp.eq.s32.totalorder %s24, 1
      %p105 = por %p103, %p104
      %p106 = scmp.ne.s32.totalorder %s97, %s98
      %p107 = scmp.eq.s32.totalorder %s24, 0
      %p108 = por %p106, %p107
      %p109 = scmp.ne.s32.totalorder %s97, %s98
      %p110 = scmp.eq.s32.totalorder %s25, 1
      %p111 = por %p109, %p110
      %p113 = scmp.ne.s32.totalorder %s98, %s112
      %p114 = scmp.eq.s32.totalorder %s25, 0
      %p115 = por %p113, %p114
      %s117 = sadd.s32 %s116, 1
      %p120 = scmp.eq.s32.totalorder %s19, 1
      %p121 = scmp.ne.s32.totalorder %s116, %s118
      %p122 = scmp.eq.s32.totalorder %s19, 0
      %p123 = por %p121, %p122
      %p124 = scmp.ne.s32.totalorder %s116, %s118
      %p125 = scmp.eq.s32.totalorder %s24, 1
      %p126 = por %p124, %p125
      %p127 = scmp.ne.s32.totalorder %s118, %s119
      %p128 = scmp.eq.s32.totalorder %s24, 0
      %p129 = por %p127, %p128
      %p130 = scmp.ne.s32.totalorder %s118, %s119
      %p131 = scmp.eq.s32.totalorder %s25, 1
      %p132 = por %p130, %p131
      %p134 = scmp.ne.s32.totalorder %s119, %s133
      %p135 = scmp.eq.s32.totalorder %s25, 0
      %p136 = por %p134, %p135
      %s137 = ssub.s32 %s19, %s26
      %p138 = scmp.eq.s32.totalorder %s137, 0
      %s140 = sadd.s32 %s139, 1
      %s141 = scalar_select %p138, %s139, %s140
      %p144 = pneg %p138
      %p145 = scmp.eq.s32.totalorder %s19, 1
      %p146 = por %p144, %p145
      %p147 = scmp.ne.s32.totalorder %s139, %s142
      %p148 = scmp.eq.s32.totalorder %s19, 0
      %p149 = por %p147, %p148
      %p150 = scmp.ne.s32.totalorder %s139, %s142
      %p151 = scmp.eq.s32.totalorder %s24, 1
      %p152 = por %p150, %p151
      %p153 = scmp.ne.s32.totalorder %s142, %s143
      %p154 = scmp.eq.s32.totalorder %s24, 0
      %p155 = por %p153, %p154
      %p156 = scmp.ne.s32.totalorder %s142, %s143
      %p157 = scmp.eq.s32.totalorder %s25, 1
      %p158 = por %p156, %p157
      %p160 = scmp.ne.s32.totalorder %s143, %s159
      %p161 = scmp.eq.s32.totalorder %s25, 0
      %p162 = por %p160, %p161
      %p163 = scmp.le.s32.totalorder 1, %s19
      %p164 = scmp.lt.s32.totalorder %s19, 3
      %p165 = pnand %p163, %p164
      %p166 = pneg %p165
      // Predicated region
      $region9: #{tpu_custom_call.1} parent=5 // pred_check
        _
      $region10: #{tpu_custom_call.1} parent=5 // pred_check_branch
        %168 = sbr.rel (%p165) target = $region12
      $region11: #{tpu_custom_call.1} parent=5 // pred_region
        %s169 = ssub.s32 %s19, 1
        // Predicated region
        $region13: #{tpu_custom_call.1} parent=11 // pred_check
          %p170 = pneg %p66
        $region14: #{tpu_custom_call.1} parent=11 // pred_check_branch
          %172 = sbr.rel (%p170) target = $region16
        $region15: #{tpu_custom_call.1} parent=11 // pred_region
          %s174 = ssub.s32 1024, 1024
          %175 = vsyncadd [#allocation6], %s174
          %s176 = sshll.u32 [#allocation5], 4
          %s177 = int_to_ptr.vmem [resolvable:$true] %s176
          %182 = dma.hbm_to_vmem [thread:$0]  %s1, 1024, %s177, [#allocation6], 64, 64, 4
        $region16: #{tpu_custom_call.1} parent=11 // pred_fallthru
          _
        // Predicated region
        $region17: #{tpu_custom_call.1} parent=11 // pred_check
          %p183 = pneg %p87
        $region18: #{tpu_custom_call.1} parent=11 // pred_check_branch
          %185 = sbr.rel (%p183) target = $region20
        $region19: #{tpu_custom_call.1} parent=11 // pred_region
          %s187 = ssub.s32 16, 16
          %188 = vsyncadd [#allocation6], %s187
          %s190 = sshll.u32 [#allocation7], 4
          %s191 = int_to_ptr.vmem [resolvable:$true] %s190
          %193 = dma.hbm_to_vmem [thread:$0]  %s2, 16, %s191, [#allocation6]
        $region20: #{tpu_custom_call.1} parent=11 // pred_fallthru
          _
        // Predicated region
        $region21: #{tpu_custom_call.1} parent=11 // pred_check
          %p194 = pneg %p108
        $region22: #{tpu_custom_call.1} parent=11 // pred_check_branch
          %196 = sbr.rel (%p194) target = $region24
        $region23: #{tpu_custom_call.1} parent=11 // pred_region
          %s198 = ssub.s32 1024, 1024
          %199 = vsyncadd [#allocation9], %s198
          %s200 = sshll.u32 [#allocation8], 4
          %s201 = int_to_ptr.vmem [resolvable:$true] %s200
          %206 = dma.hbm_to_vmem [thread:$0]  %s3, 1024, %s201, [#allocation9], 64, 64, 4
        $region24: #{tpu_custom_call.1} parent=11 // pred_fallthru
          _
        // Predicated region
        $region25: #{tpu_custom_call.1} parent=11 // pred_check
          %p207 = pneg %p129
        $region26: #{tpu_custom_call.1} parent=11 // pred_check_branch
          %209 = sbr.rel (%p207) target = $region28
        $region27: #{tpu_custom_call.1} parent=11 // pred_region
          %s211 = ssub.s32 16, 16
          %212 = vsyncadd [#allocation9], %s211
          %s214 = sshll.u32 [#allocation10], 4
          %s215 = int_to_ptr.vmem [resolvable:$true] %s214
          %217 = dma.hbm_to_vmem [thread:$0]  %s4, 16, %s215, [#allocation9]
        $region28: #{tpu_custom_call.1} parent=11 // pred_fallthru
          _
      $region12: #{tpu_custom_call.1} parent=5 // pred_fallthru
        _
      %p218 = scmp.lt.s32.totalorder %s19, 2
      // Predicated region
      $region29: #{tpu_custom_call.1} parent=5 // pred_check
        %p219 = pneg %p218
      $region30: #{tpu_custom_call.1} parent=5 // pred_check_branch
        %221 = sbr.rel (%p219) target = $region32
      $region31: #{tpu_custom_call.1} parent=5 // pred_region
        // Predicated region
        $region33: #{tpu_custom_call.1} parent=31 // pred_check
          %p222 = pneg %p39
        $region34: #{tpu_custom_call.1} parent=31 // pred_check_branch
          %224 = sbr.rel (%p222) target = $region36
        $region35: #{tpu_custom_call.1} parent=31 // pred_region
          %s225 = sand.u32 %s29, 1
          %s226 = scalar_lea.sflag [#allocation3], %s225
          %s227 = sand.u32 %s29, 1
          %s228 = scalar_lea.vmem [#allocation2], %s227
          %s230 = ssub.s32 16, 16
          %231 = vsyncadd %s226, %s230
          %s232 = smul.addr %s19, 16
          %s233 = scalar_lea.hbm %s0, %s232
          %s235 = sshll.u32 %s228, 4
          %s236 = int_to_ptr.vmem [resolvable:$true] %s235
          %238 = dma.hbm_to_vmem [thread:$0]  %s233, 16, %s236, %s226
        $region36: #{tpu_custom_call.1} parent=31 // pred_fallthru
          _
      $region32: #{tpu_custom_call.1} parent=5 // pred_fallthru
        _
      %p239 = scmp.le.s32.totalorder 1, %s19
      %p240 = scmp.lt.s32.totalorder %s19, 3
      %p241 = pnand %p239, %p240
      %p242 = pneg %p241
      // Predicated region
      $region37: #{tpu_custom_call.1} parent=5 // pred_check
        _
      $region38: #{tpu_custom_call.1} parent=5 // pred_check_branch
        %244 = sbr.rel (%p241) target = $region40
      $region39: #{tpu_custom_call.1} parent=5 // pred_region
        %s245 = ssub.s32 %s19, 1
        %s246 = sand.u32 %s32, 1
        %s247 = scalar_lea.sflag [#allocation3], %s246
        %s248 = sand.u32 %s32, 1
        %s249 = scalar_lea.vmem [#allocation2], %s248
        // Predicated region
        $region41: #{tpu_custom_call.1} parent=39 // pred_check
          %p250 = pneg %p45
        $region42: #{tpu_custom_call.1} parent=39 // pred_check_branch
          %252 = sbr.rel (%p250) target = $region44
        $region43: #{tpu_custom_call.1} parent=39 // pred_region
          %253 = dma.done %s247, 16
        $region44: #{tpu_custom_call.1} parent=39 // pred_fallthru
          _
        // Predicated region
        $region45: #{tpu_custom_call.1} parent=39 // pred_check
          %p254 = pneg %p66
        $region46: #{tpu_custom_call.1} parent=39 // pred_check_branch
          %256 = sbr.rel (%p254) target = $region48
        $region47: #{tpu_custom_call.1} parent=39 // pred_region
          %257 = dma.done [#allocation6], 1024
        $region48: #{tpu_custom_call.1} parent=39 // pred_fallthru
          _
        // Predicated region
        $region49: #{tpu_custom_call.1} parent=39 // pred_check
          %p258 = pneg %p87
        $region50: #{tpu_custom_call.1} parent=39 // pred_check_branch
          %260 = sbr.rel (%p258) target = $region52
        $region51: #{tpu_custom_call.1} parent=39 // pred_region
          %261 = dma.done [#allocation6], 16
        $region52: #{tpu_custom_call.1} parent=39 // pred_fallthru
          _
        // Predicated region
        $region53: #{tpu_custom_call.1} parent=39 // pred_check
          %p262 = pneg %p108
        $region54: #{tpu_custom_call.1} parent=39 // pred_check_branch
          %264 = sbr.rel (%p262) target = $region56
        $region55: #{tpu_custom_call.1} parent=39 // pred_region
          %265 = dma.done [#allocation9], 1024
        $region56: #{tpu_custom_call.1} parent=39 // pred_fallthru
          _
        // Predicated region
        $region57: #{tpu_custom_call.1} parent=39 // pred_check
          %p266 = pneg %p129
        $region58: #{tpu_custom_call.1} parent=39 // pred_check_branch
          %268 = sbr.rel (%p266) target = $region60
        $region59: #{tpu_custom_call.1} parent=39 // pred_region
          %269 = dma.done [#allocation9], 16
        $region60: #{tpu_custom_call.1} parent=39 // pred_fallthru
          _
        %s270 = sand.u32 %s32, 1
        %s271 = scalar_lea.sflag [#allocation3], %s270
        %s272 = sand.u32 %s32, 1
        %s273 = scalar_lea.vmem [#allocation2], %s272
        %p274 = pneg %p45
        %p275 = pneg %p42
        %p276 = pneg %p66
        %p277 = pneg %p63
        %p278 = pneg %p87
        %p279 = pneg %p84
        %p280 = pneg %p108
        %p281 = pneg %p105
        %p282 = pneg %p129
        %p283 = pneg %p126
        %p284 = pneg %p155
        %p285 = pneg %p152
        %s286 = sand.u32 %s142, 1
        %s287 = scalar_lea.sflag [#allocation4], %s286
        %s288 = sand.u32 %s142, 1
        %s289 = scalar_lea.vmem [#allocation11], %s288
        %v291 = vld [vmem:[%s249] sm:$0x1]
        %v292 = vld [vmem:[#allocation5] sm:$0xf]
        %v293 = vld [vmem:[#allocation5 + $0x4] sm:$0xf]
        %v294 = vld [vmem:[#allocation5 + $0x8] sm:$0xf]
        %v295 = vld [vmem:[#allocation5 + $0xc] sm:$0xf]
        %v296 = vld [vmem:[#allocation5 + $0x10] sm:$0xf]
        %v297 = vld [vmem:[#allocation5 + $0x14] sm:$0xf]
        %v298 = vld [vmem:[#allocation5 + $0x18] sm:$0xf]
        %v299 = vld [vmem:[#allocation5 + $0x1c] sm:$0xf]
        %v300 = vld [vmem:[#allocation5 + $0x20] sm:$0xf]
        %v301 = vld [vmem:[#allocation5 + $0x24] sm:$0xf]
        %v302 = vld [vmem:[#allocation5 + $0x28] sm:$0xf]
        %v303 = vld [vmem:[#allocation5 + $0x2c] sm:$0xf]
        %v304 = vld [vmem:[#allocation5 + $0x30] sm:$0xf]
        %v305 = vld [vmem:[#allocation5 + $0x34] sm:$0xf]
        %v306 = vld [vmem:[#allocation5 + $0x38] sm:$0xf]
        %v307 = vld [vmem:[#allocation5 + $0x3c] sm:$0xf]
        %v308 = vld [vmem:[#allocation7] sm:$0x1]
        %v325 = vunpack.c.l.b16 %v292
        %v326 = vunpack.c.l.b16 %v293
        %v327 = vunpack.c.l.b16 %v294
        %v328 = vunpack.c.l.b16 %v295
        %v329 = vunpack.c.l.b16 %v296
        %v330 = vunpack.c.l.b16 %v297
        %v331 = vunpack.c.l.b16 %v298
        %v332 = vunpack.c.l.b16 %v299
        %v333 = vunpack.c.l.b16 %v300
        %v334 = vunpack.c.l.b16 %v301
        %v335 = vunpack.c.l.b16 %v302
        %v336 = vunpack.c.l.b16 %v303
        %v337 = vunpack.c.l.b16 %v304
        %v338 = vunpack.c.l.b16 %v305
        %v339 = vunpack.c.l.b16 %v306
        %v340 = vunpack.c.l.b16 %v307
        %v341 = vpack.c.b16 %v326, %v325
        %v342 = vpack.c.b16 %v328, %v327
        %v343 = vpack.c.b16 %v330, %v329
        %v344 = vpack.c.b16 %v332, %v331
        %v345 = vpack.c.b16 %v334, %v333
        %v346 = vpack.c.b16 %v336, %v335
        %v347 = vpack.c.b16 %v338, %v337
        %v348 = vpack.c.b16 %v340, %v339
        %357 = vmatprep.subr.bf16.mxu0 0
        %358 = vmatpush1.bf16.msra.mxu0 %v341
        %359 = vmatprep.subr.bf16.mxu0 0
        %360 = vmatpush1.bf16.msra.mxu0 %v342
        %361 = vmatprep.subr.bf16.mxu0 0
        %362 = vmatpush1.bf16.msra.mxu0 %v343
        %363 = vmatprep.subr.bf16.mxu0 0
        %364 = vmatpush1.bf16.msra.mxu0 %v344
        %365 = vmatprep.subr.bf16.mxu0 0
        %366 = vmatpush1.bf16.msra.mxu0 %v345
        %367 = vmatprep.subr.bf16.mxu0 0
        %368 = vmatpush1.bf16.msra.mxu0 %v346
        %369 = vmatprep.subr.bf16.mxu0 0
        %370 = vmatpush1.bf16.msra.mxu0 %v347
        %371 = vmatprep.subr.bf16.mxu0 0
        %372 = vmatpush1.bf16.msra.mxu0 %v348
        %373 = vmatprep.subr.bf16.mxu0 0
        %374 = vmatpush1.bf16.msra.mxu0 0
        %375 = vmatprep.subr.bf16.mxu0 0
        %376 = vmatpush1.bf16.msra.mxu0 0
        %377 = vmatprep.subr.bf16.mxu0 0
        %378 = vmatpush1.bf16.msra.mxu0 0
        %379 = vmatprep.subr.bf16.mxu0 0
        %380 = vmatpush1.bf16.msra.mxu0 0
        %381 = vmatprep.subr.bf16.mxu0 0
        %382 = vmatpush1.bf16.msra.mxu0 0
        %383 = vmatprep.subr.bf16.mxu0 0
        %384 = vmatpush1.bf16.msra.mxu0 0
        %385 = vmatprep.subr.bf16.mxu0 0
        %386 = vmatpush1.bf16.msra.mxu0 0
        %387 = vmatprep.subr.bf16.mxu0 0
        %388 = vmatpush1.bf16.msra.mxu0 0
        %389 = vmatprep.mubr.bf16.mxu0 0
        %390 = vmatmul.mubr.bf16.gmra.mrb[0].mxu0 %v291
        %v391 = vpop.f32.mrb[0].mxu0
        %v392 = vadd.f32 %v308, %v391
        %v393 = vpop.f32.mrb[0].mxu0
        %v394 = vpop.f32.mrb[0].mxu0
        %v395 = vpop.f32.mrb[0].mxu0
        %396 = vdwg.mxu0
        %v397 = vmax.f32 %v392, 0.0
        %v398 = vpack.c.bf16 %v397, %v397
        %v399 = vld [vmem:[#allocation8] sm:$0xf]
        %v400 = vld [vmem:[#allocation8 + $0x4] sm:$0xf]
        %v401 = vld [vmem:[#allocation8 + $0x8] sm:$0xf]
        %v402 = vld [vmem:[#allocation8 + $0xc] sm:$0xf]
        %v403 = vld [vmem:[#allocation8 + $0x10] sm:$0xf]
        %v404 = vld [vmem:[#allocation8 + $0x14] sm:$0xf]
        %v405 = vld [vmem:[#allocation8 + $0x18] sm:$0xf]
        %v406 = vld [vmem:[#allocation8 + $0x1c] sm:$0xf]
        %v407 = vld [vmem:[#allocation8 + $0x20] sm:$0xf]
        %v408 = vld [vmem:[#allocation8 + $0x24] sm:$0xf]
        %v409 = vld [vmem:[#allocation8 + $0x28] sm:$0xf]
        %v410 = vld [vmem:[#allocation8 + $0x2c] sm:$0xf]
        %v411 = vld [vmem:[#allocation8 + $0x30] sm:$0xf]
        %v412 = vld [vmem:[#allocation8 + $0x34] sm:$0xf]
        %v413 = vld [vmem:[#allocation8 + $0x38] sm:$0xf]
        %v414 = vld [vmem:[#allocation8 + $0x3c] sm:$0xf]
        %v415 = vld [vmem:[#allocation10] sm:$0x1]
        %v432 = vunpack.c.l.b16 %v399
        %v433 = vunpack.c.l.b16 %v400
        %v434 = vunpack.c.l.b16 %v401
        %v435 = vunpack.c.l.b16 %v402
        %v436 = vunpack.c.l.b16 %v403
        %v437 = vunpack.c.l.b16 %v404
        %v438 = vunpack.c.l.b16 %v405
        %v439 = vunpack.c.l.b16 %v406
        %v440 = vunpack.c.l.b16 %v407
        %v441 = vunpack.c.l.b16 %v408
        %v442 = vunpack.c.l.b16 %v409
        %v443 = vunpack.c.l.b16 %v410
        %v444 = vunpack.c.l.b16 %v411
        %v445 = vunpack.c.l.b16 %v412
        %v446 = vunpack.c.l.b16 %v413
        %v447 = vunpack.c.l.b16 %v414
        %v448 = vpack.c.b16 %v433, %v432
        %v449 = vpack.c.b16 %v435, %v434
        %v450 = vpack.c.b16 %v437, %v436
        %v451 = vpack.c.b16 %v439, %v438
        %v452 = vpack.c.b16 %v441, %v440
        %v453 = vpack.c.b16 %v443, %v442
        %v454 = vpack.c.b16 %v445, %v444
        %v455 = vpack.c.b16 %v447, %v446
        %464 = vmatprep.subr.bf16.mxu0 0
        %465 = vmatpush1.bf16.msra.mxu0 %v448
        %466 = vmatprep.subr.bf16.mxu0 0
        %467 = vmatpush1.bf16.msra.mxu0 %v449
        %468 = vmatprep.subr.bf16.mxu0 0
        %469 = vmatpush1.bf16.msra.mxu0 %v450
        %470 = vmatprep.subr.bf16.mxu0 0
        %471 = vmatpush1.bf16.msra.mxu0 %v451
        %472 = vmatprep.subr.bf16.mxu0 0
        %473 = vmatpush1.bf16.msra.mxu0 %v452
        %474 = vmatprep.subr.bf16.mxu0 0
        %475 = vmatpush1.bf16.msra.mxu0 %v453
        %476 = vmatprep.subr.bf16.mxu0 0
        %477 = vmatpush1.bf16.msra.mxu0 %v454
        %478 = vmatprep.subr.bf16.mxu0 0
        %479 = vmatpush1.bf16.msra.mxu0 %v455
        %480 = vmatprep.subr.bf16.mxu0 0
        %481 = vmatpush1.bf16.msra.mxu0 0
        %482 = vmatprep.subr.bf16.mxu0 0
        %483 = vmatpush1.bf16.msra.mxu0 0
        %484 = vmatprep.subr.bf16.mxu0 0
        %485 = vmatpush1.bf16.msra.mxu0 0
        %486 = vmatprep.subr.bf16.mxu0 0
        %487 = vmatpush1.bf16.msra.mxu0 0
        %488 = vmatprep.subr.bf16.mxu0 0
        %489 = vmatpush1.bf16.msra.mxu0 0
        %490 = vmatprep.subr.bf16.mxu0 0
        %491 = vmatpush1.bf16.msra.mxu0 0
        %492 = vmatprep.subr.bf16.mxu0 0
        %493 = vmatpush1.bf16.msra.mxu0 0
        %494 = vmatprep.subr.bf16.mxu0 0
        %495 = vmatpush1.bf16.msra.mxu0 0
        %496 = vmatprep.mubr.bf16.mxu0 0
        %497 = vmatmul.mubr.bf16.gmra.mrb[0].mxu0 %v398
        %v498 = vpop.f32.mrb[0].mxu0
        %v499 = vadd.f32 %v415, %v498
        %v500 = vpop.f32.mrb[0].mxu0
        %v501 = vpop.f32.mrb[0].mxu0
        %v502 = vpop.f32.mrb[0].mxu0
        %503 = vdwg.mxu0
        %504 = vst [vmem:[%s289] sm:$0x1] %v499
        %s505 = sand.u32 %s142, 1
        %s506 = scalar_lea.sflag [#allocation4], %s505
        %s507 = sand.u32 %s142, 1
        %s508 = scalar_lea.vmem [#allocation11], %s507
        // Predicated region
        $region61: #{tpu_custom_call.1} parent=39 // pred_check
          %p509 = pneg %p152
        $region62: #{tpu_custom_call.1} parent=39 // pred_check_branch
          %511 = sbr.rel (%p509) target = $region64
        $region63: #{tpu_custom_call.1} parent=39 // pred_region
          %s513 = ssub.s32 16, 16
          %514 = vsyncadd %s506, %s513
          %s515 = smul.addr %s24, 16
          %s516 = scalar_lea.hbm %s5, %s515
          %s518 = sshll.u32 %s508, 4
          %s519 = int_to_ptr.vmem [resolvable:$true] %s518
          %521 = dma.vmem_to_hbm [thread:$0]  %s519, 16, %s516, %s506
        $region64: #{tpu_custom_call.1} parent=39 // pred_fallthru
          _
      $region40: #{tpu_custom_call.1} parent=5 // pred_fallthru
        _
      %p522 = scmp.le.s32.totalorder 2, %s19
      // Predicated region
      $region65: #{tpu_custom_call.1} parent=5 // pred_check
        %p523 = pneg %p522
      $region66: #{tpu_custom_call.1} parent=5 // pred_check_branch
        %525 = sbr.rel (%p523) target = $region68
      $region67: #{tpu_custom_call.1} parent=5 // pred_region
        %s526 = ssub.s32 %s19, 2
        // Predicated region
        $region69: #{tpu_custom_call.1} parent=67 // pred_check
          %p527 = pneg %p158
        $region70: #{tpu_custom_call.1} parent=67 // pred_check_branch
          %529 = sbr.rel (%p527) target = $region72
        $region71: #{tpu_custom_call.1} parent=67 // pred_region
          %s530 = sand.u32 %s143, 1
          %s531 = scalar_lea.sflag [#allocation4], %s530
          %s532 = sand.u32 %s143, 1
          %s533 = scalar_lea.vmem [#allocation11], %s532
          %534 = dma.done %s531, 16
        $region72: #{tpu_custom_call.1} parent=67 // pred_fallthru
          _
      $region68: #{tpu_custom_call.1} parent=5 // pred_fallthru
        _
    $region6: #{tpu_custom_call.1} parent=1 // loop_footer
      %s23 = sadd.s32 1, %s19
    $region7: #{tpu_custom_call.1} parent=1 // loop_footer_branch
      %18 = sbr.rel target = $region3
    $region8: #{tpu_custom_call.1} parent=1 // loop_exit
      _
    %535 = vsyncpa [#allocation3], 1
    %s536 = scalar_lea.sflag [#allocation3], 1
    %537 = vsyncpa %s536, 1
    %538 = vsyncpa [#allocation6], 1
    %539 = vsyncpa [#allocation9], 1
    %540 = vsyncpa [#allocation4], 1
    %s541 = scalar_lea.sflag [#allocation4], 1
    %542 = vsyncpa %s541, 1

</llo_original>
